<compile_context>
chip_gen: v6e
topology: v6e:2x2x1
jax: 0.10.0
libtpu: 0.0.40
codegen_flags: <defaults>
</compile_context>

<pallas_src>
import jax
import jax.numpy as jnp
from jax.experimental import pallas as pl
from jax.experimental.pallas import tpu as pltpu


def convblock_kernel(x_ref, wband_ref, b_ref, o_ref, xpad_ref):
    # x_ref:     (1, H, W*Cin)       one image, NHWC rows flattened channel-minor
    # wband_ref: (3, W*Cin, W*Cout)  band weight (dx taps + W zero-pad folded in)
    # b_ref:     (1, W*Cout)         bias tiled across W
    # o_ref:     (1, H, W*Cout)      lane-dense output rows
    # xpad_ref:  (H+2, W*Cin)        VMEM scratch: input zero-padded in H only
    H = x_ref.shape[1]
    kh = wband_ref.shape[0]

    # Vertical zero-padding done in-kernel (replaces wrapper-side jnp.pad).
    xpad_ref[...] = jnp.zeros_like(xpad_ref)
    xpad_ref[1:H + 1, :] = x_ref[0]

    # 3x3 conv == sum over the 3 row taps of one (H, W*Cin) x (W*Cin, W*Cout)
    # MXU matmul each; f32 accumulation.
    acc = jnp.zeros(o_ref.shape[1:], dtype=jnp.float32)
    for dy in range(kh):
        acc = acc + jnp.dot(xpad_ref[dy:dy + H, :], wband_ref[dy],
                            preferred_element_type=jnp.float32)

    acc = acc + b_ref[...]                                   # bias (broadcast over H)
    o_ref[0] = jnp.maximum(acc, 0.0).astype(o_ref.dtype)     # ReLU, unmasked lane-dense store


def _make_band_weight(weight_oihw, W):
    """Fold the 3 horizontal taps + horizontal zero-padding into a band matrix.

    Returns wband of shape (3, W*Cin, W*Cout) with
      wband[dy, w'*Cin+ci, w*Cout+co] = weight[co, ci, dy, w'-w+1]  if |w'-w| <= 1
                                        0                            otherwise
    """
    w_hwio = jnp.transpose(weight_oihw, (2, 3, 1, 0))        # (3, 3, Cin, Cout)
    Cin, Cout = w_hwio.shape[2], w_hwio.shape[3]
    wp = jnp.arange(W)
    d = wp[:, None] - wp[None, :] + 1                        # d[w', w] = dx index
    valid = (d >= 0) & (d <= 2)
    dcl = jnp.clip(d, 0, 2)
    gath = w_hwio[:, dcl]                                    # (3, W, W, Cin, Cout)
    gath = jnp.where(valid[None, :, :, None, None], gath, 0.0)
    wband = jnp.transpose(gath, (0, 1, 3, 2, 4))             # (3, W, Cin, W, Cout)
    return wband.reshape(3, W * Cin, W * Cout)


@jax.jit
def conv_block(x_nchw, weight_oihw, bias):
    """ConvBlock forward. x_nchw: (B, Cin, H, W) f32. Returns (B, Cout, H, W)."""
    B, Cin, H, W = x_nchw.shape
    Cout = weight_oihw.shape[0]

    # NCHW -> NHWC, then flatten each row channel-minor: (B, H, W*Cin).
    x_r = jnp.transpose(x_nchw, (0, 2, 3, 1)).reshape(B, H, W * Cin)

    wband = _make_band_weight(weight_oihw, W)                # (3, W*Cin, W*Cout)
    b_tiled = jnp.tile(bias, W).reshape(1, W * Cout)         # (1, W*Cout)

    out = pl.pallas_call(
        convblock_kernel,
        out_shape=jax.ShapeDtypeStruct((B, H, W * Cout), x_nchw.dtype),
        grid=(B,),
        in_specs=[
            pl.BlockSpec((1, H, W * Cin), lambda i: (i, 0, 0)),
            pl.BlockSpec((3, W * Cin, W * Cout), lambda i: (0, 0, 0)),
            pl.BlockSpec((1, W * Cout), lambda i: (0, 0)),
        ],
        out_specs=pl.BlockSpec((1, H, W * Cout), lambda i: (i, 0, 0)),
        scratch_shapes=[pltpu.VMEM((H + 2, W * Cin), jnp.float32)],
        compiler_params=pltpu.CompilerParams(
            dimension_semantics=("parallel",)),
    )(x_r, wband, b_tiled)

    # (B, H, W*Cout) -> (B, H, W, Cout) -> NCHW (module's output convention).
    return jnp.transpose(out.reshape(B, H, W, Cout), (0, 3, 1, 2))


def reference_conv_block(x_nchw, weight_oihw, bias):
    out = jax.lax.conv_general_dilated(
        x_nchw, weight_oihw, window_strides=(1, 1),
        padding=((1, 1), (1, 1)),
        dimension_numbers=("NCHW", "OIHW", "NCHW"))
    out = out + bias[None, :, None, None]
    return jnp.maximum(out, 0.0)


if __name__ == "__main__":
    B, Cin, Cout, H, W = 2, 4, 8, 16, 16

    key = jax.random.PRNGKey(0)
    kx, kw, kb = jax.random.split(key, 3)

    x = jax.random.normal(kx, (B, Cin, H, W), dtype=jnp.float32)
    # Deterministic synthetic Conv2d(in_channels=4, out_channels=8, k=3) params.
    fan_in = Cin * 3 * 3
    weight = jax.random.normal(kw, (Cout, Cin, 3, 3), dtype=jnp.float32) / jnp.sqrt(fan_in)
    bias = jax.random.normal(kb, (Cout,), dtype=jnp.float32) * 0.1

    out = conv_block(x, weight, bias)
    out = jax.block_until_ready(out)

    ref = reference_conv_block(x, weight, bias)
    assert out.shape == (B, Cout, H, W), out.shape
    assert jnp.allclose(out, ref, atol=1e-4, rtol=1e-4), "mismatch vs XLA conv reference"

    print("KERNEL_OK")
</pallas_src>

<mosaic_0001>
module attributes {stable_mosaic.version = 11 : i64} {
  func.func @convblock_kernel(%arg0: i32, %arg1: memref<1x16x64xf32, #tpu.memory_space<vmem>>, %arg2: memref<3x64x128xf32, #tpu.memory_space<vmem>>, %arg3: memref<1x128xf32, #tpu.memory_space<vmem>>, %arg4: memref<1x16x128xf32, #tpu.memory_space<vmem>>, %arg5: memref<18x64xf32, #tpu.memory_space<vmem>>) attributes {dimension_semantics = [#tpu.dimension_semantics<parallel>], iteration_bounds = array<i64: 2>, scalar_prefetch = 0 : i64, scratch_operands = 1 : i64, tpu.core_type = #tpu.core_type<tc>, window_params = [{transform_indices = @transform_0, window_bounds = array<i64: 1, 16, 64>}, {pipeline_mode = #tpu.pipeline_mode<synchronous>, transform_indices = @transform_1, window_bounds = array<i64: 3, 64, 128>}, {pipeline_mode = #tpu.pipeline_mode<synchronous>, transform_indices = @transform_2, window_bounds = array<i64: 1, 128>}, {transform_indices = @transform_3, window_bounds = array<i64: 1, 16, 128>}]} {
    %cst = arith.constant 0.000000e+00 : f32
    %0 = vector.broadcast %cst : f32 to vector<18x64xf32>
    %c0 = arith.constant 0 : index
    %c0_0 = arith.constant 0 : index
    %1 = vector.load %arg5[%c0, %c0_0] : memref<18x64xf32, #tpu.memory_space<vmem>>, vector<18x64xf32>
    tpu.vector_store %arg5[%c0, %c0_0], %0 {strides = array<i32>} : memref<18x64xf32, #tpu.memory_space<vmem>>, vector<18x64xf32>,
    %c0_1 = arith.constant 0 : index
    %c0_2 = arith.constant 0 : index
    %c0_3 = arith.constant 0 : index
    %2 = vector.load %arg1[%c0_1, %c0_2, %c0_3] : memref<1x16x64xf32, #tpu.memory_space<vmem>>, vector<1x16x64xf32>
    %3 = vector.shape_cast %2 : vector<1x16x64xf32> to vector<16x64xf32>
    %c1 = arith.constant 1 : index
    %c0_4 = arith.constant 0 : index
    %4 = vector.load %arg5[%c1, %c0_4] : memref<18x64xf32, #tpu.memory_space<vmem>>, vector<16x64xf32>
    tpu.vector_store %arg5[%c1, %c0_4], %3 {strides = array<i32>} : memref<18x64xf32, #tpu.memory_space<vmem>>, vector<16x64xf32>,
    %cst_5 = arith.constant 0.000000e+00 : f32
    %5 = vector.broadcast %cst_5 : f32 to vector<16x128xf32>
    %c0_6 = arith.constant 0 : index
    %c0_7 = arith.constant 0 : index
    %6 = vector.load %arg5[%c0_6, %c0_7] : memref<18x64xf32, #tpu.memory_space<vmem>>, vector<16x64xf32>
    %c0_8 = arith.constant 0 : index
    %c0_9 = arith.constant 0 : index
    %c0_10 = arith.constant 0 : index
    %7 = vector.load %arg2[%c0_8, %c0_9, %c0_10] : memref<3x64x128xf32, #tpu.memory_space<vmem>>, vector<1x64x128xf32>
    %8 = vector.shape_cast %7 : vector<1x64x128xf32> to vector<64x128xf32>
    %cst_11 = arith.constant dense<0.000000e+00> : vector<16x128xf32>
    %9 = tpu.matmul %6, %8, %cst_11 {dimension_numbers = #tpu.dot_dimension_numbers<[1], [0], [0], [1], [0, 0, 1, 1], [], []>} : vector<16x64xf32>, vector<64x128xf32>, vector<16x128xf32> -> vector<16x128xf32>
    %10 = arith.addf %5, %9 : vector<16x128xf32>
    %c1_12 = arith.constant 1 : index
    %c0_13 = arith.constant 0 : index
    %11 = vector.load %arg5[%c1_12, %c0_13] : memref<18x64xf32, #tpu.memory_space<vmem>>, vector<16x64xf32>
    %c1_14 = arith.constant 1 : index
    %c0_15 = arith.constant 0 : index
    %c0_16 = arith.constant 0 : index
    %12 = vector.load %arg2[%c1_14, %c0_15, %c0_16] : memref<3x64x128xf32, #tpu.memory_space<vmem>>, vector<1x64x128xf32>
    %13 = vector.shape_cast %12 : vector<1x64x128xf32> to vector<64x128xf32>
    %cst_17 = arith.constant dense<0.000000e+00> : vector<16x128xf32>
    %14 = tpu.matmul %11, %13, %cst_17 {dimension_numbers = #tpu.dot_dimension_numbers<[1], [0], [0], [1], [0, 0, 1, 1], [], []>} : vector<16x64xf32>, vector<64x128xf32>, vector<16x128xf32> -> vector<16x128xf32>
    %15 = arith.addf %10, %14 : vector<16x128xf32>
    %c2 = arith.constant 2 : index
    %c0_18 = arith.constant 0 : index
    %16 = vector.load %arg5[%c2, %c0_18] : memref<18x64xf32, #tpu.memory_space<vmem>>, vector<16x64xf32>
    %c2_19 = arith.constant 2 : index
    %c0_20 = arith.constant 0 : index
    %c0_21 = arith.constant 0 : index
    %17 = vector.load %arg2[%c2_19, %c0_20, %c0_21] : memref<3x64x128xf32, #tpu.memory_space<vmem>>, vector<1x64x128xf32>
    %18 = vector.shape_cast %17 : vector<1x64x128xf32> to vector<64x128xf32>
    %cst_22 = arith.constant dense<0.000000e+00> : vector<16x128xf32>
    %19 = tpu.matmul %16, %18, %cst_22 {dimension_numbers = #tpu.dot_dimension_numbers<[1], [0], [0], [1], [0, 0, 1, 1], [], []>} : vector<16x64xf32>, vector<64x128xf32>, vector<16x128xf32> -> vector<16x128xf32>
    %20 = arith.addf %15, %19 : vector<16x128xf32>
    %c0_23 = arith.constant 0 : index
    %c0_24 = arith.constant 0 : index
    %21 = vector.load %arg3[%c0_23, %c0_24] : memref<1x128xf32, #tpu.memory_space<vmem>>, vector<1x128xf32>
    %22 = vector.broadcast %21 : vector<1x128xf32> to vector<16x128xf32>
    %23 = arith.addf %20, %22 : vector<16x128xf32>
    %cst_25 = arith.constant 0.000000e+00 : f32
    %24 = vector.broadcast %cst_25 : f32 to vector<16x128xf32>
    %25 = arith.maximumf %23, %24 : vector<16x128xf32>
    %c0_26 = arith.constant 0 : index
    %c0_27 = arith.constant 0 : index
    %c0_28 = arith.constant 0 : index
    %26 = vector.load %arg4[%c0_26, %c0_27, %c0_28] : memref<1x16x128xf32, #tpu.memory_space<vmem>>, vector<1x16x128xf32>
    %27 = vector.shape_cast %26 : vector<1x16x128xf32> to vector<16x128xf32>
    %28 = vector.shape_cast %25 : vector<16x128xf32> to vector<1x16x128xf32>
    tpu.vector_store %arg4[%c0_26, %c0_27, %c0_28], %28 {strides = array<i32>} : memref<1x16x128xf32, #tpu.memory_space<vmem>>, vector<1x16x128xf32>,
    return
  }
  func.func @transform_0(%arg0: i32) -> (i32, i32, i32) {
    %c0_i32 = arith.constant 0 : i32
    %c0_i32_0 = arith.constant 0 : i32
    %c0_i32_1 = arith.constant 0 : i32
    return %arg0, %c0_i32, %c0_i32_0 : i32, i32, i32
  }
  func.func @transform_1(%arg0: i32) -> (i32, i32, i32) {
    %c0_i32 = arith.constant 0 : i32
    %c0_i32_0 = arith.constant 0 : i32
    %c0_i32_1 = arith.constant 0 : i32
    %c0_i32_2 = arith.constant 0 : i32
    return %c0_i32, %c0_i32_0, %c0_i32_1 : i32, i32, i32
  }
  func.func @transform_2(%arg0: i32) -> (i32, i32) {
    %c0_i32 = arith.constant 0 : i32
    %c0_i32_0 = arith.constant 0 : i32
    %c0_i32_1 = arith.constant 0 : i32
    return %c0_i32, %c0_i32_0 : i32, i32
  }
  func.func @transform_3(%arg0: i32) -> (i32, i32, i32) {
    %c0_i32 = arith.constant 0 : i32
    %c0_i32_0 = arith.constant 0 : i32
    %c0_i32_1 = arith.constant 0 : i32
    return %arg0, %c0_i32, %c0_i32_0 : i32, i32, i32
  }
}

</mosaic_0001>

<llo_original>
// kernel: tile.8
$region0: #{tile.8}
  #allocation0 [shape = 's32[1]{0}', space=sflag, size = 0x4, scoped, tag = 'scoped memory for tile.8']
  %s0 = inlined_call_operand.vmem [shape: f32[8], index: 0, kind: input, shape index: {}]
  %s1 = inlined_call_operand.vmem [shape: f32[16,8], index: 1, kind: output, shape index: {}]
  // Predicated region
  $region2: #{tile.8} parent=0 // pred_check
    _
  $region3: #{tile.8} parent=0 // pred_check_branch
    %3 = sbr.rel (0) target = $region5
  $region4: #{tile.8} parent=0 // pred_region
    _
  $region5: #{tile.8} parent=0 // pred_fallthru
    _
  %v4 = vld [vmem:[%s0] ss:$0 sm:$0xff]
  %5 = vst [vmem:[%s1] sm:$0xff] %v4
  %s6 = scalar_lea.vmem %s1, 8
  %7 = vst [vmem:[%s6] sm:$0xff] %v4

// kernel: tile.9
$region0: #{tile.9}
  %s0 = inlined_call_operand.vmem [shape: f32[16,8], index: 0, kind: input, shape index: {}]
  %s1 = inlined_call_operand.vmem [shape: f32[1,128], index: 1, kind: output, shape index: {}]
  $region1: #{tile.9} parent=0
    #allocation0 [shape = 'u8[4096]{0}', space=vmem, size = 0x1000, scoped, tag = 'scoped mem for output reshape']
    %v2 = vld [vmem:[%s0] sm:$0x1]
    %vm3 = vcmask 64512
    %4 = vst.msk [vmem:[#allocation0] sm:$0x1] %vm3, %v2
    %s5 = scalar_lea.vmem %s0, 15
    %v6 = vld [vmem:[%s5] sm:$0x1]
    %7 = vrot.lane.b32.xlu0 %v6, 120
    %v8 = vpop.permute.xlu0 %7
    %vm9 = vcmask 1048512
    %10 = vst.msk [vmem:[#allocation0] sm:$0x1] %vm9, %v8
    %s11 = scalar_lea.vmem %s0, 14
    %v12 = vld [vmem:[%s11] sm:$0x1]
    %13 = vrot.lane.b32.xlu0 %v12, 112
    %v14 = vpop.permute.xlu0 %13
    %vm15 = vcmask 982912
    %16 = vst.msk [vmem:[#allocation0] sm:$0x1] %vm15, %v14
    %s17 = scalar_lea.vmem %s0, 13
    %v18 = vld [vmem:[%s17] sm:$0x1]
    %19 = vrot.lane.b32.xlu0 %v18, 104
    %v20 = vpop.permute.xlu0 %19
    %vm21 = vcmask 917312
    %22 = vst.msk [vmem:[#allocation0] sm:$0x1] %vm21, %v20
    %s23 = scalar_lea.vmem %s0, 12
    %v24 = vld [vmem:[%s23] sm:$0x1]
    %25 = vrot.lane.b32.xlu0 %v24, 96
    %v26 = vpop.permute.xlu0 %25
    %vm27 = vcmask 851712
    %28 = vst.msk [vmem:[#allocation0] sm:$0x1] %vm27, %v26
    %s29 = scalar_lea.vmem %s0, 11
    %v30 = vld [vmem:[%s29] sm:$0x1]
    %31 = vrot.lane.b32.xlu0 %v30, 88
    %v32 = vpop.permute.xlu0 %31
    %vm33 = vcmask 786112
    %34 = vst.msk [vmem:[#allocation0] sm:$0x1] %vm33, %v32
    %s35 = scalar_lea.vmem %s0, 10
    %v36 = vld [vmem:[%s35] sm:$0x1]
    %37 = vrot.lane.b32.xlu0 %v36, 80
    %v38 = vpop.permute.xlu0 %37
    %vm39 = vcmask 720512
    %40 = vst.msk [vmem:[#allocation0] sm:$0x1] %vm39, %v38
    %s41 = scalar_lea.vmem %s0, 9
    %v42 = vld [vmem:[%s41] sm:$0x1]
    %43 = vrot.lane.b32.xlu0 %v42, 72
    %v44 = vpop.permute.xlu0 %43
    %vm45 = vcmask 654912
    %46 = vst.msk [vmem:[#allocation0] sm:$0x1] %vm45, %v44
    %s47 = scalar_lea.vmem %s0, 8
    %v48 = vld [vmem:[%s47] sm:$0x1]
    %49 = vrot.lane.b32.xlu0 %v48, 64
    %v50 = vpop.permute.xlu0 %49
    %vm51 = vcmask 589312
    %52 = vst.msk [vmem:[#allocation0] sm:$0x1] %vm51, %v50
    %s53 = scalar_lea.vmem %s0, 7
    %v54 = vld [vmem:[%s53] sm:$0x1]
    %55 = vrot.lane.b32.xlu0 %v54, 56
    %v56 = vpop.permute.xlu0 %55
    %vm57 = vcmask 523712
    %58 = vst.msk [vmem:[#allocation0] sm:$0x1] %vm57, %v56
    %s59 = scalar_lea.vmem %s0, 6
    %v60 = vld [vmem:[%s59] sm:$0x1]
    %61 = vrot.lane.b32.xlu0 %v60, 48
    %v62 = vpop.permute.xlu0 %61
    %vm63 = vcmask 458112
    %64 = vst.msk [vmem:[#allocation0] sm:$0x1] %vm63, %v62
    %s65 = scalar_lea.vmem %s0, 5
    %v66 = vld [vmem:[%s65] sm:$0x1]
    %67 = vrot.lane.b32.xlu0 %v66, 40
    %v68 = vpop.permute.xlu0 %67
    %vm69 = vcmask 392512
    %70 = vst.msk [vmem:[#allocation0] sm:$0x1] %vm69, %v68
    %s71 = scalar_lea.vmem %s0, 4
    %v72 = vld [vmem:[%s71] sm:$0x1]
    %73 = vrot.lane.b32.xlu0 %v72, 32
    %v74 = vpop.permute.xlu0 %73
    %vm75 = vcmask 326912
    %76 = vst.msk [vmem:[#allocation0] sm:$0x1] %vm75, %v74
    %s77 = scalar_lea.vmem %s0, 3
    %v78 = vld [vmem:[%s77] sm:$0x1]
    %79 = vrot.lane.b32.xlu0 %v78, 24
    %v80 = vpop.permute.xlu0 %79
    %vm81 = vcmask 261312
    %82 = vst.msk [vmem:[#allocation0] sm:$0x1] %vm81, %v80
    %s83 = scalar_lea.vmem %s0, 2
    %v84 = vld [vmem:[%s83] sm:$0x1]
    %85 = vrot.lane.b32.xlu0 %v84, 16
    %v86 = vpop.permute.xlu0 %85
    %vm87 = vcmask 195712
    %88 = vst.msk [vmem:[#allocation0] sm:$0x1] %vm87, %v86
    %s89 = scalar_lea.vmem %s0, 1
    %v90 = vld [vmem:[%s89] sm:$0x1]
    %91 = vrot.lane.b32.xlu0 %v90, 8
    %v92 = vpop.permute.xlu0 %91
    %vm93 = vcmask 130112
    %94 = vst.msk [vmem:[#allocation0] sm:$0x1] %vm93, %v92
    %s96 = sshll.u32 1, 1
    %s97 = ssub.s32 %s96, 1
    %v99 = vld [vmem:[#allocation0] sm:%s97]
    %s100 = sshll.u32 1, 1
    %s101 = ssub.s32 %s100, 1
    %102 = vst [vmem:[%s1] sm:%s101] %v99

// kernel: conv_block.1
$region0: #{conv_block.1}
  #allocation0 [shape = 'u32[]', space=smem, size = 0x4, offset = 0x4, fixed_abs, tag = 'smem constant byte address 0x4 - core index']
  #allocation1 [shape = 'u32[144,128]{1,0:T(1,128)}', space=vmem, size = 0x12000, scoped, tag = 'internal scratch']
  #allocation2 [shape = 'f32[18,64]{1,0:T(8,128)}', space=vmem, size = 0x3000, scoped, tag = 'scratch operand']
  %s0 = inlined_call_operand.vmem [shape: f32[2,16,64], index: 0, kind: input, shape index: {}]
  %s1 = inlined_call_operand.vmem [shape: f32[3,64,128], index: 1, kind: input, shape index: {}]
  %s2 = inlined_call_operand.vmem [shape: f32[1,128], index: 2, kind: input, shape index: {}]
  %s3 = inlined_call_operand.vmem [shape: f32[2,16,128], index: 3, kind: output, shape index: {}]
  %s4 = sld [smem:[#allocation0]]
  $region45: #{conv_block.1} parent=0
    _
  %s6 = ssub.s32 1, %s4
  %s7 = scalar_select 0, %s6, %s4
  loop: start=0, step=1, limit=4
  $region2: #{conv_block.1} parent=0 // loop_pre_header
    _
  $region3: #{conv_block.1} parent=0 // loop_header
    %s9 = sphi 0, %s13
    %p10 = scmp.ge.s32.totalorder %s9, 4
    %s19 = sphi 0, %s21
    %s22 = sphi 0, %s19
    %s23 = sphi 0, %s22
    %s39 = sphi 0, %s23
    %s43 = sphi 0, %s43
    %s45 = sphi 0, %s43
    %s46 = sphi 0, %s45
    %s60 = sphi 0, %s46
    %s64 = sphi 0, %s64
    %s66 = sphi 0, %s64
    %s67 = sphi 0, %s66
    %s81 = sphi 0, %s67
    %s87 = sphi 0, %s89
    %s90 = sphi 0, %s87
    %s91 = sphi 0, %s90
    %s107 = sphi 0, %s91
  $region4: #{conv_block.1} parent=0 // loop_header_branch
    %12 = sbr.rel (%p10) target = $region8
  $region5: #{conv_block.1} parent=0 // loop_body
    %s14 = ssub.s32 %s9, 1
    %s15 = ssub.s32 %s9, 2
    %s16 = sadd.s32 %s9, 1
    %s17 = ssub.s32 %s9, %s16
    %p18 = scmp.eq.s32.totalorder %s17, 0
    %s20 = sadd.s32 %s19, 1
    %s21 = scalar_select %p18, %s19, %s20
    %p24 = pneg %p18
    %p25 = scmp.eq.s32.totalorder %s9, 1
    %p26 = por %p24, %p25
    %p27 = scmp.ne.s32.totalorder %s19, %s22
    %p28 = scmp.eq.s32.totalorder %s9, 0
    %p29 = por %p27, %p28
    %p30 = scmp.ne.s32.totalorder %s19, %s22
    %p31 = scmp.eq.s32.totalorder %s14, 1
    %p32 = por %p30, %p31
    %p33 = scmp.ne.s32.totalorder %s22, %s23
    %p34 = scmp.eq.s32.totalorder %s14, 0
    %p35 = por %p33, %p34
    %p36 = scmp.ne.s32.totalorder %s22, %s23
    %p37 = scmp.eq.s32.totalorder %s15, 1
    %p38 = por %p36, %p37
    %p40 = scmp.ne.s32.totalorder %s23, %s39
    %p41 = scmp.eq.s32.totalorder %s15, 0
    %p42 = por %p40, %p41
    %s44 = sadd.s32 %s43, 1
    %p47 = scmp.eq.s32.totalorder %s9, 1
    %p48 = scmp.ne.s32.totalorder %s43, %s45
    %p49 = scmp.eq.s32.totalorder %s9, 0
    %p50 = por %p48, %p49
    %p51 = scmp.ne.s32.totalorder %s43, %s45
    %p52 = scmp.eq.s32.totalorder %s14, 1
    %p53 = por %p51, %p52
    %p54 = scmp.ne.s32.totalorder %s45, %s46
    %p55 = scmp.eq.s32.totalorder %s14, 0
    %p56 = por %p54, %p55
    %p57 = scmp.ne.s32.totalorder %s45, %s46
    %p58 = scmp.eq.s32.totalorder %s15, 1
    %p59 = por %p57, %p58
    %p61 = scmp.ne.s32.totalorder %s46, %s60
    %p62 = scmp.eq.s32.totalorder %s15, 0
    %p63 = por %p61, %p62
    %s65 = sadd.s32 %s64, 1
    %p68 = scmp.eq.s32.totalorder %s9, 1
    %p69 = scmp.ne.s32.totalorder %s64, %s66
    %p70 = scmp.eq.s32.totalorder %s9, 0
    %p71 = por %p69, %p70
    %p72 = scmp.ne.s32.totalorder %s64, %s66
    %p73 = scmp.eq.s32.totalorder %s14, 1
    %p74 = por %p72, %p73
    %p75 = scmp.ne.s32.totalorder %s66, %s67
    %p76 = scmp.eq.s32.totalorder %s14, 0
    %p77 = por %p75, %p76
    %p78 = scmp.ne.s32.totalorder %s66, %s67
    %p79 = scmp.eq.s32.totalorder %s15, 1
    %p80 = por %p78, %p79
    %p82 = scmp.ne.s32.totalorder %s67, %s81
    %p83 = scmp.eq.s32.totalorder %s15, 0
    %p84 = por %p82, %p83
    %s85 = ssub.s32 %s9, %s16
    %p86 = scmp.eq.s32.totalorder %s85, 0
    %s88 = sadd.s32 %s87, 1
    %s89 = scalar_select %p86, %s87, %s88
    %p92 = pneg %p86
    %p93 = scmp.eq.s32.totalorder %s9, 1
    %p94 = por %p92, %p93
    %p95 = scmp.ne.s32.totalorder %s87, %s90
    %p96 = scmp.eq.s32.totalorder %s9, 0
    %p97 = por %p95, %p96
    %p98 = scmp.ne.s32.totalorder %s87, %s90
    %p99 = scmp.eq.s32.totalorder %s14, 1
    %p100 = por %p98, %p99
    %p101 = scmp.ne.s32.totalorder %s90, %s91
    %p102 = scmp.eq.s32.totalorder %s14, 0
    %p103 = por %p101, %p102
    %p104 = scmp.ne.s32.totalorder %s90, %s91
    %p105 = scmp.eq.s32.totalorder %s15, 1
    %p106 = por %p104, %p105
    %p108 = scmp.ne.s32.totalorder %s91, %s107
    %p109 = scmp.eq.s32.totalorder %s15, 0
    %p110 = por %p108, %p109
    %p111 = scmp.le.s32.totalorder 1, %s9
    %p112 = scmp.lt.s32.totalorder %s9, 3
    %p113 = pnand %p111, %p112
    %p114 = pneg %p113
    // Predicated region
    $region9: #{conv_block.1} parent=5 // pred_check
      _
    $region10: #{conv_block.1} parent=5 // pred_check_branch
      %116 = sbr.rel (%p113) target = $region12
    $region11: #{conv_block.1} parent=5 // pred_region
      %s117 = ssub.s32 %s9, 1
      // Predicated region
      $region13: #{conv_block.1} parent=11 // pred_check
        %p118 = pneg %p56
      $region14: #{conv_block.1} parent=11 // pred_check_branch
        %120 = sbr.rel (%p118) target = $region16
      $region15: #{conv_block.1} parent=11 // pred_region
        _
      $region16: #{conv_block.1} parent=11 // pred_fallthru
        _
      // Predicated region
      $region17: #{conv_block.1} parent=11 // pred_check
        %p121 = pneg %p77
      $region18: #{conv_block.1} parent=11 // pred_check_branch
        %123 = sbr.rel (%p121) target = $region20
      $region19: #{conv_block.1} parent=11 // pred_region
        _
      $region20: #{conv_block.1} parent=11 // pred_fallthru
        _
    $region12: #{conv_block.1} parent=5 // pred_fallthru
      _
    %p124 = scmp.lt.s32.totalorder %s9, 2
    // Predicated region
    $region21: #{conv_block.1} parent=5 // pred_check
      %p125 = pneg %p124
    $region22: #{conv_block.1} parent=5 // pred_check_branch
      %127 = sbr.rel (%p125) target = $region24
    $region23: #{conv_block.1} parent=5 // pred_region
      // Predicated region
      $region25: #{conv_block.1} parent=23 // pred_check
        %p128 = pneg %p29
      $region26: #{conv_block.1} parent=23 // pred_check_branch
        %130 = sbr.rel (%p128) target = $region28
      $region27: #{conv_block.1} parent=23 // pred_region
        %p131 = scmp.lt.s32.totalorder %s9, 1
        %s132 = scalar_select %p131, %s9, 1
        %s133 = smul.addr %s132, 2
        %s134 = smul.addr %s133, 8
        %s135 = scalar_lea.vmem %s0, %s134
      $region28: #{conv_block.1} parent=23 // pred_fallthru
        _
    $region24: #{conv_block.1} parent=5 // pred_fallthru
      _
    %p136 = scmp.le.s32.totalorder 1, %s9
    %p137 = scmp.lt.s32.totalorder %s9, 3
    %p138 = pnand %p136, %p137
    %p139 = pneg %p138
    // Predicated region
    $region29: #{conv_block.1} parent=5 // pred_check
      _
    $region30: #{conv_block.1} parent=5 // pred_check_branch
      %141 = sbr.rel (%p138) target = $region32
    $region31: #{conv_block.1} parent=5 // pred_region
      %s142 = ssub.s32 %s9, 1
      %p143 = scmp.lt.s32.totalorder %s14, 1
      %s144 = scalar_select %p143, %s14, 1
      %s145 = smul.addr %s144, 2
      %s146 = smul.addr %s145, 8
      %s147 = scalar_lea.vmem %s0, %s146
      %p148 = pneg %p35
      %p149 = pneg %p32
      %p150 = pneg %p56
      %p151 = pneg %p53
      %p152 = pneg %p77
      %p153 = pneg %p74
      %p154 = pneg %p103
      %p155 = pneg %p100
      %p156 = scmp.lt.s32.totalorder %s14, 1
      %s157 = scalar_select %p156, %s14, 1
      %s158 = smul.addr %s157, 2
      %s159 = smul.addr %s158, 8
      %s160 = scalar_lea.vmem %s3, %s159
      %p161 = scmp.lt.s32.totalorder %s14, 1
      %s162 = scalar_select %p161, %s14, 1
      %s163 = smul.addr %s162, 2
      %s164 = smul.addr %s163, 8
      %s165 = scalar_lea.vmem %s0, %s164
      %p166 = scmp.lt.s32.totalorder %s14, 1
      %s167 = scalar_select %p166, %s14, 1
      %s168 = smul.addr %s167, 2
      %s169 = smul.addr %s168, 8
      %s170 = scalar_lea.vmem %s3, %s169
      %vm171 = vcmask 523264
      %172 = vst.msk [vmem:[#allocation2] sm:$0xff] %vm171, 0.0
      %173 = vst.msk [vmem:[#allocation2 + $0x8] sm:$0xff] %vm171, 0.0
      %vm174 = vcmask 517120
      %175 = vst.msk [vmem:[#allocation2 + $0x10] sm:$0x3] %vm174, 0.0
      %v176 = vld [vmem:[%s165] sm:$0xff]
      %v177 = vld [vmem:[%s165 + $0x8] sm:$0xff]
      %178 = vst.msk [vmem:[#allocation2 + $0x1] sm:$0xff] %vm171, %v176
      %179 = vst.msk [vmem:[#allocation2 + $0x9] sm:$0xff] %vm171, %v177
      %v180 = vld [vmem:[#allocation2] sm:$0xff]
      %v181 = vld [vmem:[#allocation2 + $0x8] sm:$0xff]
      %v182 = vld [vmem:[%s1] sm:$0xff]
      %v183 = vld [vmem:[%s1 + $0x8] sm:$0xff]
      %v184 = vld [vmem:[%s1 + $0x10] sm:$0xff]
      %v185 = vld [vmem:[%s1 + $0x18] sm:$0xff]
      %v186 = vld [vmem:[%s1 + $0x20] sm:$0xff]
      %v187 = vld [vmem:[%s1 + $0x28] sm:$0xff]
      %v188 = vld [vmem:[%s1 + $0x30] sm:$0xff]
      %v189 = vld [vmem:[%s1 + $0x38] sm:$0xff]
      %v190 = vld [vmem:[#allocation2 + $0x1] sm:$0xff]
      %v191 = vld [vmem:[#allocation2 + $0x9] sm:$0xff]
      %s192 = scalar_lea.vmem %s1, 64
      %v193 = vld [vmem:[%s192] sm:$0xff]
      %v194 = vld [vmem:[%s192 + $0x8] sm:$0xff]
      %v195 = vld [vmem:[%s192 + $0x10] sm:$0xff]
      %v196 = vld [vmem:[%s192 + $0x18] sm:$0xff]
      %v197 = vld [vmem:[%s192 + $0x20] sm:$0xff]
      %v198 = vld [vmem:[%s192 + $0x28] sm:$0xff]
      %v199 = vld [vmem:[%s192 + $0x30] sm:$0xff]
      %v200 = vld [vmem:[%s192 + $0x38] sm:$0xff]
      %v202 = vsel %vm171, %v190, 0
      %v205 = vsel %vm171, %v191, 0
      %207 = vmatprep.subr.mxu0 0.0
      %208 = vmatpush1.msra.mxu0 0.0
      %209 = vmatprep.subr.mxu0 0.0
      %210 = vmatpush1.msra.mxu0 0.0
      %211 = vmatprep.subr.mxu0 0.0
      %212 = vmatpush1.msra.mxu0 0.0
      %213 = vmatprep.subr.mxu0 0.0
      %214 = vmatpush1.msra.mxu0 0.0
      %215 = vmatprep.subr.mxu0 0.0
      %216 = vmatpush1.msra.mxu0 0.0
      %217 = vmatprep.subr.mxu0 0.0
      %218 = vmatpush1.msra.mxu0 0.0
      %219 = vmatprep.subr.mxu0 0.0
      %220 = vmatpush1.msra.mxu0 0.0
      %221 = vmatprep.subr.mxu0 0.0
      %222 = vmatpush1.msra.mxu0 0.0
      %223 = vmatprep.subr.mxu0 0.0
      %224 = vmatpush1.msra.mxu0 %v200
      %225 = vmatprep.subr.mxu0 0.0
      %226 = vmatpush1.msra.mxu0 %v199
      %227 = vmatprep.subr.mxu0 0.0
      %228 = vmatpush1.msra.mxu0 %v198
      %229 = vmatprep.subr.mxu0 0.0
      %230 = vmatpush1.msra.mxu0 %v197
      %231 = vmatprep.subr.mxu0 0.0
      %232 = vmatpush1.msra.mxu0 %v196
      %233 = vmatprep.subr.mxu0 0.0
      %234 = vmatpush1.msra.mxu0 %v195
      %235 = vmatprep.subr.mxu0 0.0
      %236 = vmatpush1.msra.mxu0 %v194
      %237 = vmatprep.subr.mxu0 0.0
      %238 = vmatpush1.msra.mxu0 %v193
      %239 = vmatprep.subr.mxu0 0.0
      %240 = vmatpush2.msra.mxu0 0.0
      %241 = vmatprep.subr.mxu0 0.0
      %242 = vmatpush2.msra.mxu0 0.0
      %243 = vmatprep.subr.mxu0 0.0
      %244 = vmatpush2.msra.mxu0 0.0
      %245 = vmatprep.subr.mxu0 0.0
      %246 = vmatpush2.msra.mxu0 0.0
      %247 = vmatprep.subr.mxu0 0.0
      %248 = vmatpush2.msra.mxu0 0.0
      %249 = vmatprep.subr.mxu0 0.0
      %250 = vmatpush2.msra.mxu0 0.0
      %251 = vmatprep.subr.mxu0 0.0
      %252 = vmatpush2.msra.mxu0 0.0
      %253 = vmatprep.subr.mxu0 0.0
      %254 = vmatpush2.msra.mxu0 0.0
      %255 = vmatprep.subr.mxu0 0.0
      %256 = vmatpush2.msra.mxu0 0.0
      %257 = vmatprep.subr.mxu0 0.0
      %258 = vmatpush2.msra.mxu0 0.0
      %259 = vmatprep.subr.mxu0 0.0
      %260 = vmatpush2.msra.mxu0 0.0
      %261 = vmatprep.subr.mxu0 0.0
      %262 = vmatpush2.msra.mxu0 0.0
      %263 = vmatprep.subr.mxu0 0.0
      %264 = vmatpush2.msra.mxu0 0.0
      %265 = vmatprep.subr.mxu0 0.0
      %266 = vmatpush2.msra.mxu0 0.0
      %267 = vmatprep.subr.mxu0 0.0
      %268 = vmatpush2.msra.mxu0 0.0
      %269 = vmatprep.subr.mxu0 0.0
      %270 = vmatpush2.msra.mxu0 0.0
      %271 = vmatprep.mubr.f32.mxu0 0.0
      %272 = vmatmul.mubr.f32.gmra.mxu0 %v202
      %v273 = vpop.f32.mrf.mxu0
      %v274 = vadd.f32 0.0, %v273
      %v275 = vpop.f32.mrf.mxu0
      %276 = vmatprep.mubr.f32.mxu0 0.0
      %277 = vmatmul.mubr.f32.gmra.mxu0 %v205
      %v278 = vpop.f32.mrf.mxu0
      %v279 = vadd.f32 0.0, %v278
      %v280 = vpop.f32.mrf.mxu0
      %281 = vdwg.mxu0
      %v283 = vsel %vm171, %v180, 0
      %v286 = vsel %vm171, %v181, 0
      %288 = vmatprep.subr.mxu0 0.0
      %289 = vmatpush1.msra.mxu0 0.0
      %290 = vmatprep.subr.mxu0 0.0
      %291 = vmatpush1.msra.mxu0 0.0
      %292 = vmatprep.subr.mxu0 0.0
      %293 = vmatpush1.msra.mxu0 0.0
      %294 = vmatprep.subr.mxu0 0.0
      %295 = vmatpush1.msra.mxu0 0.0
      %296 = vmatprep.subr.mxu0 0.0
      %297 = vmatpush1.msra.mxu0 0.0
      %298 = vmatprep.subr.mxu0 0.0
      %299 = vmatpush1.msra.mxu0 0.0
      %300 = vmatprep.subr.mxu0 0.0
      %301 = vmatpush1.msra.mxu0 0.0
      %302 = vmatprep.subr.mxu0 0.0
      %303 = vmatpush1.msra.mxu0 0.0
      %304 = vmatprep.subr.mxu0 0.0
      %305 = vmatpush1.msra.mxu0 %v189
      %306 = vmatprep.subr.mxu0 0.0
      %307 = vmatpush1.msra.mxu0 %v188
      %308 = vmatprep.subr.mxu0 0.0
      %309 = vmatpush1.msra.mxu0 %v187
      %310 = vmatprep.subr.mxu0 0.0
      %311 = vmatpush1.msra.mxu0 %v186
      %312 = vmatprep.subr.mxu0 0.0
      %313 = vmatpush1.msra.mxu0 %v185
      %314 = vmatprep.subr.mxu0 0.0
      %315 = vmatpush1.msra.mxu0 %v184
      %316 = vmatprep.subr.mxu0 0.0
      %317 = vmatpush1.msra.mxu0 %v183
      %318 = vmatprep.subr.mxu0 0.0
      %319 = vmatpush1.msra.mxu0 %v182
      %320 = vmatprep.subr.mxu0 0.0
      %321 = vmatpush2.msra.mxu0 0.0
      %322 = vmatprep.subr.mxu0 0.0
      %323 = vmatpush2.msra.mxu0 0.0
      %324 = vmatprep.subr.mxu0 0.0
      %325 = vmatpush2.msra.mxu0 0.0
      %326 = vmatprep.subr.mxu0 0.0
      %327 = vmatpush2.msra.mxu0 0.0
      %328 = vmatprep.subr.mxu0 0.0
      %329 = vmatpush2.msra.mxu0 0.0
      %330 = vmatprep.subr.mxu0 0.0
      %331 = vmatpush2.msra.mxu0 0.0
      %332 = vmatprep.subr.mxu0 0.0
      %333 = vmatpush2.msra.mxu0 0.0
      %334 = vmatprep.subr.mxu0 0.0
      %335 = vmatpush2.msra.mxu0 0.0
      %336 = vmatprep.subr.mxu0 0.0
      %337 = vmatpush2.msra.mxu0 0.0
      %338 = vmatprep.subr.mxu0 0.0
      %339 = vmatpush2.msra.mxu0 0.0
      %340 = vmatprep.subr.mxu0 0.0
      %341 = vmatpush2.msra.mxu0 0.0
      %342 = vmatprep.subr.mxu0 0.0
      %343 = vmatpush2.msra.mxu0 0.0
      %344 = vmatprep.subr.mxu0 0.0
      %345 = vmatpush2.msra.mxu0 0.0
      %346 = vmatprep.subr.mxu0 0.0
      %347 = vmatpush2.msra.mxu0 0.0
      %348 = vmatprep.subr.mxu0 0.0
      %349 = vmatpush2.msra.mxu0 0.0
      %350 = vmatprep.subr.mxu0 0.0
      %351 = vmatpush2.msra.mxu0 0.0
      %352 = vmatprep.mubr.f32.mxu0 0.0
      %353 = vmatmul.mubr.f32.gmra.mxu0 %v283
      %v354 = vpop.f32.mrf.mxu0
      %v355 = vadd.f32 %v274, %v354
      %v356 = vpop.f32.mrf.mxu0
      %357 = vmatprep.mubr.f32.mxu0 0.0
      %358 = vmatmul.mubr.f32.gmra.mxu0 %v286
      %v359 = vpop.f32.mrf.mxu0
      %v360 = vadd.f32 %v279, %v359
      %v361 = vpop.f32.mrf.mxu0
      %362 = vdwg.mxu0
      %v363 = vld [vmem:[#allocation2 + $0x2] sm:$0xff]
      %v364 = vld [vmem:[#allocation2 + $0xa] sm:$0xff]
      %s365 = scalar_lea.vmem %s1, 128
      %v366 = vld [vmem:[%s365] sm:$0xff]
      %v367 = vld [vmem:[%s365 + $0x8] sm:$0xff]
      %v368 = vld [vmem:[%s365 + $0x10] sm:$0xff]
      %v369 = vld [vmem:[%s365 + $0x18] sm:$0xff]
      %v370 = vld [vmem:[%s365 + $0x20] sm:$0xff]
      %v371 = vld [vmem:[%s365 + $0x28] sm:$0xff]
      %v372 = vld [vmem:[%s365 + $0x30] sm:$0xff]
      %v373 = vld [vmem:[%s365 + $0x38] sm:$0xff]
      %v375 = vsel %vm171, %v363, 0
      %v378 = vsel %vm171, %v364, 0
      %380 = vmatprep.subr.mxu0 0.0
      %381 = vmatpush1.msra.mxu0 0.0
      %382 = vmatprep.subr.mxu0 0.0
      %383 = vmatpush1.msra.mxu0 0.0
      %384 = vmatprep.subr.mxu0 0.0
      %385 = vmatpush1.msra.mxu0 0.0
      %386 = vmatprep.subr.mxu0 0.0
      %387 = vmatpush1.msra.mxu0 0.0
      %388 = vmatprep.subr.mxu0 0.0
      %389 = vmatpush1.msra.mxu0 0.0
      %390 = vmatprep.subr.mxu0 0.0
      %391 = vmatpush1.msra.mxu0 0.0
      %392 = vmatprep.subr.mxu0 0.0
      %393 = vmatpush1.msra.mxu0 0.0
      %394 = vmatprep.subr.mxu0 0.0
      %395 = vmatpush1.msra.mxu0 0.0
      %396 = vmatprep.subr.mxu0 0.0
      %397 = vmatpush1.msra.mxu0 %v373
      %398 = vmatprep.subr.mxu0 0.0
      %399 = vmatpush1.msra.mxu0 %v372
      %400 = vmatprep.subr.mxu0 0.0
      %401 = vmatpush1.msra.mxu0 %v371
      %402 = vmatprep.subr.mxu0 0.0
      %403 = vmatpush1.msra.mxu0 %v370
      %404 = vmatprep.subr.mxu0 0.0
      %405 = vmatpush1.msra.mxu0 %v369
      %406 = vmatprep.subr.mxu0 0.0
      %407 = vmatpush1.msra.mxu0 %v368
      %408 = vmatprep.subr.mxu0 0.0
      %409 = vmatpush1.msra.mxu0 %v367
      %410 = vmatprep.subr.mxu0 0.0
      %411 = vmatpush1.msra.mxu0 %v366
      %412 = vmatprep.subr.mxu0 0.0
      %413 = vmatpush2.msra.mxu0 0.0
      %414 = vmatprep.subr.mxu0 0.0
      %415 = vmatpush2.msra.mxu0 0.0
      %416 = vmatprep.subr.mxu0 0.0
      %417 = vmatpush2.msra.mxu0 0.0
      %418 = vmatprep.subr.mxu0 0.0
      %419 = vmatpush2.msra.mxu0 0.0
      %420 = vmatprep.subr.mxu0 0.0
      %421 = vmatpush2.msra.mxu0 0.0
      %422 = vmatprep.subr.mxu0 0.0
      %423 = vmatpush2.msra.mxu0 0.0
      %424 = vmatprep.subr.mxu0 0.0
      %425 = vmatpush2.msra.mxu0 0.0
      %426 = vmatprep.subr.mxu0 0.0
      %427 = vmatpush2.msra.mxu0 0.0
      %428 = vmatprep.subr.mxu0 0.0
      %429 = vmatpush2.msra.mxu0 0.0
      %430 = vmatprep.subr.mxu0 0.0
      %431 = vmatpush2.msra.mxu0 0.0
      %432 = vmatprep.subr.mxu0 0.0
      %433 = vmatpush2.msra.mxu0 0.0
      %434 = vmatprep.subr.mxu0 0.0
      %435 = vmatpush2.msra.mxu0 0.0
      %436 = vmatprep.subr.mxu0 0.0
      %437 = vmatpush2.msra.mxu0 0.0
      %438 = vmatprep.subr.mxu0 0.0
      %439 = vmatpush2.msra.mxu0 0.0
      %440 = vmatprep.subr.mxu0 0.0
      %441 = vmatpush2.msra.mxu0 0.0
      %442 = vmatprep.subr.mxu0 0.0
      %443 = vmatpush2.msra.mxu0 0.0
      %444 = vmatprep.mubr.f32.mxu0 0.0
      %445 = vmatmul.mubr.f32.gmra.mxu0 %v375
      %v446 = vpop.f32.mrf.mxu0
      %v447 = vadd.f32 0.0, %v446
      %v448 = vpop.f32.mrf.mxu0
      %449 = vmatprep.mubr.f32.mxu0 0.0
      %450 = vmatmul.mubr.f32.gmra.mxu0 %v378
      %v451 = vpop.f32.mrf.mxu0
      %v452 = vadd.f32 0.0, %v451
      %v453 = vpop.f32.mrf.mxu0
      %454 = vdwg.mxu0
      %v455 = vadd.f32 %v355, %v447
      %v456 = vadd.f32 %v360, %v452
      %v457 = vld [vmem:[%s2] sm:$0x1]
      %v459 = vlaneseq
      %v460 = vshrl.u32 %v459, 7
      %v461 = vsub.s32 0, %v460
      %v462 = vrot.slane %v457, %v461
      %v464 = vadd.f32 %v455, %v462
      %v465 = vadd.f32 %v456, %v462
      %v466 = vmax.f32 %v464, 0.0
      %v467 = vmax.f32 %v465, 0.0
      %468 = vst [vmem:[%s170] sm:$0xff] %v466
      %469 = vst [vmem:[%s170 + $0x8] sm:$0xff] %v467
      %p470 = scmp.lt.s32.totalorder %s14, 1
      %s471 = scalar_select %p470, %s14, 1
      %s472 = smul.addr %s471, 2
      %s473 = smul.addr %s472, 8
      %s474 = scalar_lea.vmem %s3, %s473
      // Predicated region
      $region33: #{conv_block.1} parent=31 // pred_check
        %p475 = pneg %p100
      $region34: #{conv_block.1} parent=31 // pred_check_branch
        %477 = sbr.rel (%p475) target = $region36
      $region35: #{conv_block.1} parent=31 // pred_region
        _
      $region36: #{conv_block.1} parent=31 // pred_fallthru
        _
    $region32: #{conv_block.1} parent=5 // pred_fallthru
      _
    %p478 = scmp.le.s32.totalorder 2, %s9
    // Predicated region
    $region37: #{conv_block.1} parent=5 // pred_check
      %p479 = pneg %p478
    $region38: #{conv_block.1} parent=5 // pred_check_branch
      %481 = sbr.rel (%p479) target = $region40
    $region39: #{conv_block.1} parent=5 // pred_region
      %s482 = ssub.s32 %s9, 2
      // Predicated region
      $region41: #{conv_block.1} parent=39 // pred_check
        %p483 = pneg %p106
      $region42: #{conv_block.1} parent=39 // pred_check_branch
        %485 = sbr.rel (%p483) target = $region44
      $region43: #{conv_block.1} parent=39 // pred_region
        %p486 = scmp.lt.s32.totalorder %s15, 1
        %s487 = scalar_select %p486, %s15, 1
        %s488 = smul.addr %s487, 2
        %s489 = smul.addr %s488, 8
        %s490 = scalar_lea.vmem %s3, %s489
      $region44: #{conv_block.1} parent=39 // pred_fallthru
        _
    $region40: #{conv_block.1} parent=5 // pred_fallthru
      _
  $region6: #{conv_block.1} parent=0 // loop_footer
    %s13 = sadd.s32 1, %s9
  $region7: #{conv_block.1} parent=0 // loop_footer_branch
    %8 = sbr.rel target = $region3
  $region8: #{conv_block.1} parent=0 // loop_exit
    _

</llo_original>
